<compile_context>
chip_gen: v5e
topology: v5e:2x2
jax: 0.10.0
libtpu: 0.0.40
codegen_flags: <defaults>
</compile_context>

<pallas_src>
import functools

import jax
import jax.numpy as jnp
from jax import lax
from jax.experimental import pallas as pl
from jax.experimental.pallas import tpu as pltpu


def _answer_searcher_kernel(onehot_ref, a_ref, b1_ref, w2_ref, b2_ref, g_ref,
                            out_ref, *, hidden, vocab, n_labels):
    # Embedding + first linear fused into one matmul (table already folded
    # into A = table_pad @ W1_cat at prep time; padding row 0 stays zero).
    h = jnp.tanh(jnp.dot(onehot_ref[...], a_ref[...],
                         preferred_element_type=jnp.float32)
                 + b1_ref[...])                                   # [B, L*H]

    batch = h.shape[0]
    # Single iota, hoisted out of the label loop and reused for both the
    # tie-break and the one-hot compare.
    iota = lax.broadcasted_iota(jnp.int32, (batch, vocab), 1)     # [B, V]

    for l in range(n_labels):  # unrolled at trace time; n_labels is tiny
        h_l = h[:, l * hidden:(l + 1) * hidden]                   # [B, H]
        # Second linear + bias + gumbel noise. The 1/tau scale is dropped:
        # argmax(x / tau) == argmax(x) for tau > 0.
        y = (jnp.dot(h_l, w2_ref[l], preferred_element_type=jnp.float32)
             + b2_ref[l] + g_ref[l])                              # [B, V]
        # Hard Gumbel-softmax forward value == one_hot(argmax(y)).
        # First-occurrence tie-break matches torch argmax semantics (ties are
        # measure-zero with continuous Gumbel noise anyway).
        m = jnp.max(y, axis=-1, keepdims=True)
        first_idx = jnp.min(jnp.where(y == m, iota, vocab),
                            axis=-1, keepdims=True)
        out_ref[l] = (iota == first_idx).astype(jnp.float32)


def prepare_params(params):
    """One-time weight-layout prep (call at init / weight update, NOT per step)."""
    table = params["cate_embeddings"]            # [n_cates+1, cate_dim]
    w1 = params["w1"]                            # [n_labels, cate_dim, hidden]
    b1 = params["b1"]                            # [n_labels, 1, hidden]
    w2 = params["w2"]                            # [n_labels, hidden, vocab]
    b2 = params["b2"]                            # [n_labels, 1, vocab]

    n_labels, cate_dim, hidden = w1.shape
    n_rows = table.shape[0]
    # Pad the embedding/contraction dim (n_cates+1) up to a multiple of 8 for a
    # clean sublane layout of the one-hot matmul.
    k_pad = ((n_rows + 7) // 8) * 8
    table_p = jnp.zeros((k_pad, cate_dim), jnp.float32).at[:n_rows].set(table)

    # Concatenate W1 along hidden, then fold the embedding table in:
    #   A = table_p @ W1_cat   -> [k_pad, L*H];  h = tanh(onehot @ A + b1_cat)
    w1_cat = jnp.transpose(w1, (1, 0, 2)).reshape(cate_dim, n_labels * hidden)
    a_fused = table_p @ w1_cat                                     # [k_pad, L*H]
    b1_cat = jnp.transpose(b1, (1, 0, 2)).reshape(1, n_labels * hidden)

    return {
        "a_fused": jnp.asarray(a_fused, jnp.float32),
        "b1_cat": jnp.asarray(b1_cat, jnp.float32),
        "w2": jnp.asarray(w2, jnp.float32),        # [L, H, V] straight through
        "b2": jnp.asarray(b2, jnp.float32),        # [L, 1, V] straight through
        "gumbel": jnp.asarray(params["gumbel_noise"], jnp.float32),  # [L, B, V]
    }


def answer_searcher_forward(ccate, prep, *, tau=1.0):
    """ccate: int32 [B]. Returns stacked [n_labels, B, vocab] one-hots.

    `tau` is accepted for API parity but is a no-op for the hard forward
    value (argmax is invariant under positive scaling).
    """
    del tau
    a_fused = prep["a_fused"]
    b1_cat = prep["b1_cat"]
    w2 = prep["w2"]
    b2 = prep["b2"]
    gumbel = prep["gumbel"]

    n_labels, hidden, vocab = w2.shape
    k_pad = a_fused.shape[0]
    B = ccate.shape[0]

    onehot = jax.nn.one_hot(ccate, k_pad, dtype=jnp.float32)       # [B, k_pad]

    kernel = functools.partial(_answer_searcher_kernel, hidden=hidden,
                               vocab=vocab, n_labels=n_labels)

    vmem = pl.BlockSpec(memory_space=pltpu.MemorySpace.VMEM)
    out = pl.pallas_call(
        kernel,
        out_shape=jax.ShapeDtypeStruct((n_labels, B, vocab), jnp.float32),
        in_specs=[vmem] * 6,
        out_specs=vmem,
    )(onehot, a_fused, b1_cat, w2, b2, gumbel)

    return out  # [n_labels, B, vocab]; out[l] corresponds to answer_pair[l]


def init_params(key, *, vocab_size, n_cates, cate_dim, hidden_size, n_labels,
                batch):
    keys = jax.random.split(key, 6)
    table = 0.02 * jax.random.normal(keys[0], (n_cates + 1, cate_dim),
                                     jnp.float32)
    table = table.at[0].set(0.0)  # padding_idx=0 row is zero
    w1 = 0.05 * jax.random.normal(keys[1], (n_labels, cate_dim, hidden_size),
                                  jnp.float32)
    b1 = 0.05 * jax.random.normal(keys[2], (n_labels, 1, hidden_size),
                                  jnp.float32)
    w2 = 0.05 * jax.random.normal(keys[3], (n_labels, hidden_size, vocab_size),
                                  jnp.float32)
    b2 = 0.05 * jax.random.normal(keys[4], (n_labels, 1, vocab_size),
                                  jnp.float32)
    # Gumbel(0,1) noise, matching F.gumbel_softmax's -log(Exp(1)) sampling.
    # TODO(synk): callers must resample this between calls to match torch's
    # per-call sampling; it is passed as an input, not generated in-kernel.
    gumbel = -jnp.log(jax.random.exponential(keys[5],
                                             (n_labels, batch, vocab_size),
                                             jnp.float32))
    return {"cate_embeddings": table, "w1": w1, "b1": b1, "w2": w2, "b2": b2,
            "gumbel_noise": gumbel}


if __name__ == "__main__":
    # config: vocab_size=256, n_cates=8, cate_dim=32, hidden_size=64,
    #         n_labels=2, tau=1.0; batch=8
    VOCAB, N_CATES, CATE_DIM, HIDDEN, N_LABELS, TAU, B = 256, 8, 32, 64, 2, 1.0, 8

    key = jax.random.PRNGKey(0)
    pkey, ckey = jax.random.split(key)
    params = init_params(pkey, vocab_size=VOCAB, n_cates=N_CATES,
                         cate_dim=CATE_DIM, hidden_size=HIDDEN,
                         n_labels=N_LABELS, batch=B)
    prep = jax.tree_util.tree_map(jax.block_until_ready,
                                  prepare_params(params))  # cached once
    ccate = jax.random.randint(ckey, (B,), 0, N_CATES + 1, dtype=jnp.int32)

    answers = jax.block_until_ready(
        answer_searcher_forward(ccate, prep, tau=TAU))

    # sanity: stacked [n_labels, B, vocab]; each row is an exact one-hot.
    assert answers.shape == (N_LABELS, B, VOCAB)
    assert bool(jnp.all((answers == 0.0) | (answers == 1.0)))
    assert bool(jnp.all(jnp.sum(answers, axis=-1) == 1.0))

    print("KERNEL_OK")
</pallas_src>

<mosaic_0001>
module attributes {stable_mosaic.version = 11 : i64} {
  func.func @_answer_searcher_kernel(%arg0: memref<8x16xf32, #tpu.memory_space<vmem>>, %arg1: memref<16x128xf32, #tpu.memory_space<vmem>>, %arg2: memref<1x128xf32, #tpu.memory_space<vmem>>, %arg3: memref<2x64x256xf32, #tpu.memory_space<vmem>>, %arg4: memref<2x1x256xf32, #tpu.memory_space<vmem>>, %arg5: memref<2x8x256xf32, #tpu.memory_space<vmem>>, %arg6: memref<2x8x256xf32, #tpu.memory_space<vmem>>) attributes {dimension_semantics = [], scalar_prefetch = 0 : i64, scratch_operands = 0 : i64, tpu.core_type = #tpu.core_type<tc>} {
    %c0 = arith.constant 0 : index
    %c0_0 = arith.constant 0 : index
    %0 = vector.load %arg0[%c0, %c0_0] : memref<8x16xf32, #tpu.memory_space<vmem>>, vector<8x16xf32>
    %c0_1 = arith.constant 0 : index
    %c0_2 = arith.constant 0 : index
    %1 = vector.load %arg1[%c0_1, %c0_2] : memref<16x128xf32, #tpu.memory_space<vmem>>, vector<16x128xf32>
    %cst = arith.constant dense<0.000000e+00> : vector<8x128xf32>
    %2 = tpu.matmul %0, %1, %cst {dimension_numbers = #tpu.dot_dimension_numbers<[1], [0], [0], [1], [0, 0, 1, 1], [], []>} : vector<8x16xf32>, vector<16x128xf32>, vector<8x128xf32> -> vector<8x128xf32>
    %c0_3 = arith.constant 0 : index
    %c0_4 = arith.constant 0 : index
    %3 = vector.load %arg2[%c0_3, %c0_4] : memref<1x128xf32, #tpu.memory_space<vmem>>, vector<1x128xf32>
    %4 = vector.broadcast %3 : vector<1x128xf32> to vector<8x128xf32>
    %5 = arith.addf %2, %4 : vector<8x128xf32>
    %6 = math.tanh %5 : vector<8x128xf32>
    %7 = tpu.iota {dimensions = array<i32: 1>} : vector<8x256xi32>
    %8 = vector.extract_strided_slice %6 {offsets = [0, 0], sizes = [8, 64], strides = [1, 1]} : vector<8x128xf32> to vector<8x64xf32>
    %c0_5 = arith.constant 0 : index
    %c0_6 = arith.constant 0 : index
    %c0_7 = arith.constant 0 : index
    %9 = vector.load %arg3[%c0_5, %c0_6, %c0_7] : memref<2x64x256xf32, #tpu.memory_space<vmem>>, vector<1x64x256xf32>
    %10 = vector.shape_cast %9 : vector<1x64x256xf32> to vector<64x256xf32>
    %cst_8 = arith.constant dense<0.000000e+00> : vector<8x256xf32>
    %11 = tpu.matmul %8, %10, %cst_8 {dimension_numbers = #tpu.dot_dimension_numbers<[1], [0], [0], [1], [0, 0, 1, 1], [], []>} : vector<8x64xf32>, vector<64x256xf32>, vector<8x256xf32> -> vector<8x256xf32>
    %c0_9 = arith.constant 0 : index
    %c0_10 = arith.constant 0 : index
    %c0_11 = arith.constant 0 : index
    %12 = vector.load %arg4[%c0_9, %c0_10, %c0_11] : memref<2x1x256xf32, #tpu.memory_space<vmem>>, vector<1x1x256xf32>
    %13 = vector.shape_cast %12 : vector<1x1x256xf32> to vector<1x256xf32>
    %14 = vector.broadcast %13 : vector<1x256xf32> to vector<8x256xf32>
    %15 = arith.addf %11, %14 : vector<8x256xf32>
    %c0_12 = arith.constant 0 : index
    %c0_13 = arith.constant 0 : index
    %c0_14 = arith.constant 0 : index
    %16 = vector.load %arg5[%c0_12, %c0_13, %c0_14] : memref<2x8x256xf32, #tpu.memory_space<vmem>>, vector<1x8x256xf32>
    %17 = vector.shape_cast %16 : vector<1x8x256xf32> to vector<8x256xf32>
    %18 = arith.addf %15, %17 : vector<8x256xf32>
    %cst_15 = arith.constant dense<0xFF800000> : vector<8xf32>
    %19 = vector.multi_reduction <maximumf>, %18, %cst_15 [1] : vector<8x256xf32> to vector<8xf32>
    %20 = vector.shape_cast %19 : vector<8xf32> to vector<8x1xf32>
    %21 = vector.broadcast %20 : vector<8x1xf32> to vector<8x256xf32>
    %22 = arith.cmpf oeq, %18, %21 : vector<8x256xf32>
    %c256_i32 = arith.constant 256 : i32
    %23 = vector.broadcast %c256_i32 : i32 to vector<8x256xi32>
    %24 = arith.select %22, %7, %23 : vector<8x256xi1>, vector<8x256xi32>
    %cst_16 = arith.constant dense<2147483647> : vector<8xi32>
    %25 = vector.multi_reduction <minsi>, %24, %cst_16 [1] : vector<8x256xi32> to vector<8xi32>
    %26 = vector.shape_cast %25 : vector<8xi32> to vector<8x1xi32>
    %27 = vector.broadcast %26 : vector<8x1xi32> to vector<8x256xi32>
    %28 = arith.cmpi eq, %7, %27 : vector<8x256xi32>
    %29 = arith.extui %28 : vector<8x256xi1> to vector<8x256xi32>
    %30 = arith.sitofp %29 : vector<8x256xi32> to vector<8x256xf32>
    %c0_17 = arith.constant 0 : index
    %c0_18 = arith.constant 0 : index
    %c0_19 = arith.constant 0 : index
    %31 = vector.load %arg6[%c0_17, %c0_18, %c0_19] : memref<2x8x256xf32, #tpu.memory_space<vmem>>, vector<1x8x256xf32>
    %32 = vector.shape_cast %31 : vector<1x8x256xf32> to vector<8x256xf32>
    %33 = vector.shape_cast %30 : vector<8x256xf32> to vector<1x8x256xf32>
    tpu.vector_store %arg6[%c0_17, %c0_18, %c0_19], %33 {strides = array<i32>} : memref<2x8x256xf32, #tpu.memory_space<vmem>>, vector<1x8x256xf32>,
    %34 = vector.extract_strided_slice %6 {offsets = [0, 64], sizes = [8, 64], strides = [1, 1]} : vector<8x128xf32> to vector<8x64xf32>
    %c1 = arith.constant 1 : index
    %c0_20 = arith.constant 0 : index
    %c0_21 = arith.constant 0 : index
    %35 = vector.load %arg3[%c1, %c0_20, %c0_21] : memref<2x64x256xf32, #tpu.memory_space<vmem>>, vector<1x64x256xf32>
    %36 = vector.shape_cast %35 : vector<1x64x256xf32> to vector<64x256xf32>
    %cst_22 = arith.constant dense<0.000000e+00> : vector<8x256xf32>
    %37 = tpu.matmul %34, %36, %cst_22 {dimension_numbers = #tpu.dot_dimension_numbers<[1], [0], [0], [1], [0, 0, 1, 1], [], []>} : vector<8x64xf32>, vector<64x256xf32>, vector<8x256xf32> -> vector<8x256xf32>
    %c1_23 = arith.constant 1 : index
    %c0_24 = arith.constant 0 : index
    %c0_25 = arith.constant 0 : index
    %38 = vector.load %arg4[%c1_23, %c0_24, %c0_25] : memref<2x1x256xf32, #tpu.memory_space<vmem>>, vector<1x1x256xf32>
    %39 = vector.shape_cast %38 : vector<1x1x256xf32> to vector<1x256xf32>
    %40 = vector.broadcast %39 : vector<1x256xf32> to vector<8x256xf32>
    %41 = arith.addf %37, %40 : vector<8x256xf32>
    %c1_26 = arith.constant 1 : index
    %c0_27 = arith.constant 0 : index
    %c0_28 = arith.constant 0 : index
    %42 = vector.load %arg5[%c1_26, %c0_27, %c0_28] : memref<2x8x256xf32, #tpu.memory_space<vmem>>, vector<1x8x256xf32>
    %43 = vector.shape_cast %42 : vector<1x8x256xf32> to vector<8x256xf32>
    %44 = arith.addf %41, %43 : vector<8x256xf32>
    %cst_29 = arith.constant dense<0xFF800000> : vector<8xf32>
    %45 = vector.multi_reduction <maximumf>, %44, %cst_29 [1] : vector<8x256xf32> to vector<8xf32>
    %46 = vector.shape_cast %45 : vector<8xf32> to vector<8x1xf32>
    %47 = vector.broadcast %46 : vector<8x1xf32> to vector<8x256xf32>
    %48 = arith.cmpf oeq, %44, %47 : vector<8x256xf32>
    %c256_i32_30 = arith.constant 256 : i32
    %49 = vector.broadcast %c256_i32_30 : i32 to vector<8x256xi32>
    %50 = arith.select %48, %7, %49 : vector<8x256xi1>, vector<8x256xi32>
    %cst_31 = arith.constant dense<2147483647> : vector<8xi32>
    %51 = vector.multi_reduction <minsi>, %50, %cst_31 [1] : vector<8x256xi32> to vector<8xi32>
    %52 = vector.shape_cast %51 : vector<8xi32> to vector<8x1xi32>
    %53 = vector.broadcast %52 : vector<8x1xi32> to vector<8x256xi32>
    %54 = arith.cmpi eq, %7, %53 : vector<8x256xi32>
    %55 = arith.extui %54 : vector<8x256xi1> to vector<8x256xi32>
    %56 = arith.sitofp %55 : vector<8x256xi32> to vector<8x256xf32>
    %c1_32 = arith.constant 1 : index
    %c0_33 = arith.constant 0 : index
    %c0_34 = arith.constant 0 : index
    %57 = vector.load %arg6[%c1_32, %c0_33, %c0_34] : memref<2x8x256xf32, #tpu.memory_space<vmem>>, vector<1x8x256xf32>
    %58 = vector.shape_cast %57 : vector<1x8x256xf32> to vector<8x256xf32>
    %59 = vector.shape_cast %56 : vector<8x256xf32> to vector<1x8x256xf32>
    tpu.vector_store %arg6[%c1_32, %c0_33, %c0_34], %59 {strides = array<i32>} : memref<2x8x256xf32, #tpu.memory_space<vmem>>, vector<1x8x256xf32>,
    return
  }
}

</mosaic_0001>

<llo_original>
// kernel: tpu_custom_call.1
$region0: #{tpu_custom_call.1}
  #allocation0 [shape = 'u32[]', space=smem, size = 0x4, offset = 0x4, fixed_abs, tag = 'smem constant byte address 0x4 - core index']
  #allocation1 [shape = 'u32[72,128]{1,0:T(1,128)}', space=vmem, size = 0x9000, scoped, tag = 'internal scratch']
  %s0 = inlined_call_operand.hbm [shape: f32[8,16], index: 0, kind: input, shape index: {}]
  %s1 = inlined_call_operand.hbm [shape: f32[16,128], index: 1, kind: input, shape index: {}]
  %s2 = inlined_call_operand.vmem [shape: f32[1,128], index: 2, kind: input, shape index: {}]
  %s3 = inlined_call_operand.hbm [shape: f32[2,64,256], index: 3, kind: input, shape index: {}]
  %s4 = inlined_call_operand.hbm [shape: f32[2,1,256], index: 4, kind: input, shape index: {}]
  %s5 = inlined_call_operand.hbm [shape: f32[2,8,256], index: 5, kind: input, shape index: {}]
  %s6 = inlined_call_operand.hbm [shape: f32[2,8,256], index: 6, kind: output, shape index: {}]
  %s7 = sld [smem:[#allocation0]]
  $region54: #{tpu_custom_call.1} parent=0
    _
  %s9 = ssub.s32 1, %s7
  %s10 = scalar_select 0, %s9, %s7
  $region1: #{tpu_custom_call.1} parent=0
    #allocation2 [shape = 'u8[4096]{0}', space=vmem, size = 0x1000, scoped, tag = 'input window, operand 0, single buffered']
    #allocation3 [shape = 's32[1]{0}', space=sflag, size = 0x4, scoped, tag = 'scoped memory for tpu_custom_call.1']
    #allocation4 [shape = 's32[1]{0}', space=sflag, size = 0x4, scoped, tag = 'scoped memory for tpu_custom_call.1']
    #allocation5 [shape = 'u8[8192]{0}', space=vmem, size = 0x2000, scoped, tag = 'input window, operand 1, single buffered']
    #allocation6 [shape = 's32[1]{0}', space=sflag, size = 0x4, scoped, tag = 'scoped memory for tpu_custom_call.1']
    #allocation7 [shape = 'u8[131072]{0}', space=vmem, size = 0x20000, scoped, tag = 'input window, operand 3, single buffered']
    #allocation8 [shape = 'u8[2048]{0}', space=vmem, size = 0x800, scoped, tag = 'input window, operand 4, single buffered']
    #allocation9 [shape = 's32[1]{0}', space=sflag, size = 0x4, scoped, tag = 'scoped memory for tpu_custom_call.1']
    #allocation10 [shape = 'u8[16384]{0}', space=vmem, size = 0x4000, scoped, tag = 'input window, operand 5, single buffered']
    #allocation11 [shape = 'u8[16384]{0}', space=vmem, size = 0x4000, scoped, tag = 'output window, operand 0, single buffered']
    %11 = vsyncpa [#allocation3], 0
    %12 = vsyncpa [#allocation6], 0
    %13 = vsyncpa [#allocation9], 0
    %14 = vsyncpa [#allocation4], 0
    // Predicated region
    $region2: #{tpu_custom_call.1} parent=1 // pred_check
      _
    $region3: #{tpu_custom_call.1} parent=1 // pred_check_branch
      %16 = sbr.rel (0) target = $region5
    $region4: #{tpu_custom_call.1} parent=1 // pred_region
      %18 = vsyncadd [#allocation3], 0
      %s20 = sshll.u32 %s0, 4
      %s21 = int_to_ptr.hbm [resolvable:$true] %s20
      %s22 = sshll.u32 [#allocation2], 4
      %s23 = int_to_ptr.vmem [resolvable:$true] %s22
      %25 = dma.hbm_to_vmem [thread:$0]  %s21, 128, %s23, [#allocation3]
    $region5: #{tpu_custom_call.1} parent=1 // pred_fallthru
      _
    // Predicated region
    $region6: #{tpu_custom_call.1} parent=1 // pred_check
      _
    $region7: #{tpu_custom_call.1} parent=1 // pred_check_branch
      %27 = sbr.rel (0) target = $region9
    $region8: #{tpu_custom_call.1} parent=1 // pred_region
      %29 = vsyncadd [#allocation6], 0
      %s30 = sshll.u32 %s1, 4
      %s31 = int_to_ptr.hbm [resolvable:$true] %s30
      %s32 = sshll.u32 [#allocation5], 4
      %s33 = int_to_ptr.vmem [resolvable:$true] %s32
      %38 = dma.hbm_to_vmem [thread:$0]  %s31, 256, %s33, [#allocation6], 128, 128, 8
    $region9: #{tpu_custom_call.1} parent=1 // pred_fallthru
      _
    // Predicated region
    $region10: #{tpu_custom_call.1} parent=1 // pred_check
      _
    $region11: #{tpu_custom_call.1} parent=1 // pred_check_branch
      %40 = sbr.rel (0) target = $region13
    $region12: #{tpu_custom_call.1} parent=1 // pred_region
      _
    $region13: #{tpu_custom_call.1} parent=1 // pred_fallthru
      _
    // Predicated region
    $region14: #{tpu_custom_call.1} parent=1 // pred_check
      _
    $region15: #{tpu_custom_call.1} parent=1 // pred_check_branch
      %42 = sbr.rel (0) target = $region17
    $region16: #{tpu_custom_call.1} parent=1 // pred_region
      %44 = vsyncadd [#allocation6], 0
      %s45 = sshll.u32 %s3, 4
      %s46 = int_to_ptr.hbm [resolvable:$true] %s45
      %s47 = sshll.u32 [#allocation7], 4
      %s48 = int_to_ptr.vmem [resolvable:$true] %s47
      %53 = dma.hbm_to_vmem [thread:$0]  %s46, 4096, %s48, [#allocation6], 256, 256, 16
    $region17: #{tpu_custom_call.1} parent=1 // pred_fallthru
      _
    // Predicated region
    $region18: #{tpu_custom_call.1} parent=1 // pred_check
      _
    $region19: #{tpu_custom_call.1} parent=1 // pred_check_branch
      %55 = sbr.rel (0) target = $region21
    $region20: #{tpu_custom_call.1} parent=1 // pred_region
      %57 = vsyncadd [#allocation9], 0
      %s58 = sshll.u32 %s4, 4
      %s59 = int_to_ptr.hbm [resolvable:$true] %s58
      %s60 = sshll.u32 [#allocation8], 4
      %s61 = int_to_ptr.vmem [resolvable:$true] %s60
      %66 = dma.hbm_to_vmem [thread:$0]  %s59, 64, %s61, [#allocation9], 32, 32, 2
    $region21: #{tpu_custom_call.1} parent=1 // pred_fallthru
      _
    // Predicated region
    $region22: #{tpu_custom_call.1} parent=1 // pred_check
      _
    $region23: #{tpu_custom_call.1} parent=1 // pred_check_branch
      %68 = sbr.rel (0) target = $region25
    $region24: #{tpu_custom_call.1} parent=1 // pred_region
      %70 = vsyncadd [#allocation9], 0
      %s71 = sshll.u32 %s5, 4
      %s72 = int_to_ptr.hbm [resolvable:$true] %s71
      %s73 = sshll.u32 [#allocation10], 4
      %s74 = int_to_ptr.vmem [resolvable:$true] %s73
      %79 = dma.hbm_to_vmem [thread:$0]  %s72, 512, %s74, [#allocation9], 256, 256, 16
    $region25: #{tpu_custom_call.1} parent=1 // pred_fallthru
      _
    // Predicated region
    $region26: #{tpu_custom_call.1} parent=1 // pred_check
      _
    $region27: #{tpu_custom_call.1} parent=1 // pred_check_branch
      %81 = sbr.rel (0) target = $region29
    $region28: #{tpu_custom_call.1} parent=1 // pred_region
      %83 = dma.done [#allocation3], 128
    $region29: #{tpu_custom_call.1} parent=1 // pred_fallthru
      _
    // Predicated region
    $region30: #{tpu_custom_call.1} parent=1 // pred_check
      _
    $region31: #{tpu_custom_call.1} parent=1 // pred_check_branch
      %85 = sbr.rel (0) target = $region33
    $region32: #{tpu_custom_call.1} parent=1 // pred_region
      %87 = dma.done [#allocation6], 256
    $region33: #{tpu_custom_call.1} parent=1 // pred_fallthru
      _
    // Predicated region
    $region34: #{tpu_custom_call.1} parent=1 // pred_check
      _
    $region35: #{tpu_custom_call.1} parent=1 // pred_check_branch
      %89 = sbr.rel (0) target = $region37
    $region36: #{tpu_custom_call.1} parent=1 // pred_region
      %91 = dma.done [#allocation6], 4096
    $region37: #{tpu_custom_call.1} parent=1 // pred_fallthru
      _
    // Predicated region
    $region38: #{tpu_custom_call.1} parent=1 // pred_check
      _
    $region39: #{tpu_custom_call.1} parent=1 // pred_check_branch
      %93 = sbr.rel (0) target = $region41
    $region40: #{tpu_custom_call.1} parent=1 // pred_region
      %95 = dma.done [#allocation9], 64
    $region41: #{tpu_custom_call.1} parent=1 // pred_fallthru
      _
    // Predicated region
    $region42: #{tpu_custom_call.1} parent=1 // pred_check
      _
    $region43: #{tpu_custom_call.1} parent=1 // pred_check_branch
      %97 = sbr.rel (0) target = $region45
    $region44: #{tpu_custom_call.1} parent=1 // pred_region
      %99 = dma.done [#allocation9], 512
    $region45: #{tpu_custom_call.1} parent=1 // pred_fallthru
      _
    %v100 = vld [vmem:[#allocation2] sm:$0xff]
    %v101 = vld [vmem:[#allocation5] sm:$0xff]
    %v102 = vld [vmem:[#allocation5 + $0x8] sm:$0xff]
    %v103 = vld [vmem:[%s2] sm:$0x1]
    %v105 = vperm.slane %v103, 0
    %vm107 = vcmask 130048
    %v109 = vsel %vm107, %v100, 0
    %111 = vmatpush.msra.mxu0 0.0
    %112 = vmatpush.msra.mxu0 0.0
    %113 = vmatpush.msra.mxu0 0.0
    %114 = vmatpush.msra.mxu0 0.0
    %115 = vmatpush.msra.mxu0 0.0
    %116 = vmatpush.msra.mxu0 0.0
    %117 = vmatpush.msra.mxu0 0.0
    %118 = vmatpush.msra.mxu0 0.0
    %119 = vmatpush.msra.mxu0 0.0
    %120 = vmatpush.msra.mxu0 0.0
    %121 = vmatpush.msra.mxu0 0.0
    %122 = vmatpush.msra.mxu0 0.0
    %123 = vmatpush.msra.mxu0 0.0
    %124 = vmatpush.msra.mxu0 0.0
    %125 = vmatpush.msra.mxu0 %v102
    %126 = vmatpush.msra.mxu0 %v101
    %127 = vmatmul.f32.gmra.mxu0 %v109
    %v128 = vpop.f32.mrf.mxu0
    %v129 = vadd.f32 %v105, %v128
    %130 = vdwg.mxu0
    %v131 = vtanh.pop %v129
    %v132 = vlaneseq
    %v133 = vand.u32 %v132, 127
    %v134 = vadd.s32 %v133, 128
    %v135 = vld [vmem:[#allocation7] sm:$0xff]
    %v136 = vld [vmem:[#allocation7 + $0x8] sm:$0xff]
    %v137 = vld [vmem:[#allocation7 + $0x10] sm:$0xff]
    %v138 = vld [vmem:[#allocation7 + $0x18] sm:$0xff]
    %v139 = vld [vmem:[#allocation7 + $0x20] sm:$0xff]
    %v140 = vld [vmem:[#allocation7 + $0x28] sm:$0xff]
    %v141 = vld [vmem:[#allocation7 + $0x30] sm:$0xff]
    %v142 = vld [vmem:[#allocation7 + $0x38] sm:$0xff]
    %v143 = vld [vmem:[#allocation7 + $0x40] sm:$0xff]
    %v144 = vld [vmem:[#allocation7 + $0x48] sm:$0xff]
    %v145 = vld [vmem:[#allocation7 + $0x50] sm:$0xff]
    %v146 = vld [vmem:[#allocation7 + $0x58] sm:$0xff]
    %v147 = vld [vmem:[#allocation7 + $0x60] sm:$0xff]
    %v148 = vld [vmem:[#allocation7 + $0x68] sm:$0xff]
    %v149 = vld [vmem:[#allocation7 + $0x70] sm:$0xff]
    %v150 = vld [vmem:[#allocation7 + $0x78] sm:$0xff]
    %v151 = vld [vmem:[#allocation8] sm:$0x3]
    %v153 = vperm.slane %v151, 0
    %v154 = vperm.slane %v151, 1
    %vm157 = vcmask 523264
    %v159 = vsel %vm157, %v131, 0
    %161 = vmatpush.msra.mxu0 0.0
    %162 = vmatpush.msra.mxu0 0.0
    %163 = vmatpush.msra.mxu0 0.0
    %164 = vmatpush.msra.mxu0 0.0
    %165 = vmatpush.msra.mxu0 0.0
    %166 = vmatpush.msra.mxu0 0.0
    %167 = vmatpush.msra.mxu0 0.0
    %168 = vmatpush.msra.mxu0 0.0
    %169 = vmatpush.msra.mxu0 %v149
    %170 = vmatpush.msra.mxu0 %v147
    %171 = vmatpush.msra.mxu0 %v145
    %172 = vmatpush.msra.mxu0 %v143
    %173 = vmatpush.msra.mxu0 %v141
    %174 = vmatpush.msra.mxu0 %v139
    %175 = vmatpush.msra.mxu0 %v137
    %176 = vmatpush.msra.mxu0 %v135
    %177 = vmatmul.f32.gmra.mxu0 %v159
    %v178 = vpop.f32.mrf.mxu0
    %v179 = vadd.f32 %v153, %v178
    %180 = vdwg.mxu0
    %181 = vmatpush.msra.mxu0 0.0
    %182 = vmatpush.msra.mxu0 0.0
    %183 = vmatpush.msra.mxu0 0.0
    %184 = vmatpush.msra.mxu0 0.0
    %185 = vmatpush.msra.mxu0 0.0
    %186 = vmatpush.msra.mxu0 0.0
    %187 = vmatpush.msra.mxu0 0.0
    %188 = vmatpush.msra.mxu0 0.0
    %189 = vmatpush.msra.mxu0 %v150
    %190 = vmatpush.msra.mxu0 %v148
    %191 = vmatpush.msra.mxu0 %v146
    %192 = vmatpush.msra.mxu0 %v144
    %193 = vmatpush.msra.mxu0 %v142
    %194 = vmatpush.msra.mxu0 %v140
    %195 = vmatpush.msra.mxu0 %v138
    %196 = vmatpush.msra.mxu0 %v136
    %197 = vmatmul.f32.gmra.mxu0 %v159
    %v198 = vpop.f32.mrf.mxu0
    %v199 = vadd.f32 %v154, %v198
    %200 = vdwg.mxu0
    %v201 = vld [vmem:[#allocation10] sm:$0xff]
    %v202 = vld [vmem:[#allocation10 + $0x8] sm:$0xff]
    %v203 = vadd.f32 %v179, %v201
    %v204 = vadd.f32 %v199, %v202
    %v205 = vmax.f32 %v203, %v204
    %206 = vmax.xlane.f32.xlu0 %v205
    %v207 = vpop.xlane.xlu0 %206
    %vm208 = vcmp.eq.f32.partialorder %v203, %v207
    %vm209 = vcmp.eq.f32.partialorder %v204, %v207
    %v210 = vsel %vm208, %v133, 256
    %v211 = vsel %vm209, %v134, 256
    %vm212 = vcmp.lt.s32.totalorder %v210, %v211
    %v213 = vsel %vm212, %v210, %v211
    %v214 = vand.u32 %v213, 65535
    %v215 = vshra.s32 %v213, 16
    %v216 = vcvt.s32.f32 %v214
    %v217 = vcvt.s32.f32 %v215
    %218 = vmin.xlane.f32.xlu0 %v217
    %v219 = vpop.xlane.xlu0 %218
    %vm220 = vcmp.eq.f32.partialorder %v217, %v219
    %v221 = vsel %vm220, %v216, inf
    %222 = vmin.xlane.f32.xlu0 %v221
    %v223 = vpop.xlane.xlu0 %222
    %v224 = vcvt.f32.s32 %v223
    %v225 = vcvt.f32.s32 %v219
    %v226 = vshll.u32 %v225, 16
    %v227 = vadd.s32 %v226, %v224
    %vm228 = vcmp.eq.s32.totalorder %v133, %v227
    %vm229 = vcmp.eq.s32.totalorder %v134, %v227
    %v230 = vsel %vm228, 1, 0
    %v231 = vsel %vm229, 1, 0
    %v232 = vcvt.s32.f32 %v230
    %v233 = vcvt.s32.f32 %v231
    %234 = vst [vmem:[#allocation11] sm:$0xff] %v232
    %235 = vst [vmem:[#allocation11 + $0x8] sm:$0xff] %v233
    %s236 = scalar_lea.vmem [#allocation7], 128
    %v237 = vld [vmem:[%s236] sm:$0xff]
    %v238 = vld [vmem:[%s236 + $0x8] sm:$0xff]
    %v239 = vld [vmem:[%s236 + $0x10] sm:$0xff]
    %v240 = vld [vmem:[%s236 + $0x18] sm:$0xff]
    %v241 = vld [vmem:[%s236 + $0x20] sm:$0xff]
    %v242 = vld [vmem:[%s236 + $0x28] sm:$0xff]
    %v243 = vld [vmem:[%s236 + $0x30] sm:$0xff]
    %v244 = vld [vmem:[%s236 + $0x38] sm:$0xff]
    %v245 = vld [vmem:[%s236 + $0x40] sm:$0xff]
    %v246 = vld [vmem:[%s236 + $0x48] sm:$0xff]
    %v247 = vld [vmem:[%s236 + $0x50] sm:$0xff]
    %v248 = vld [vmem:[%s236 + $0x58] sm:$0xff]
    %v249 = vld [vmem:[%s236 + $0x60] sm:$0xff]
    %v250 = vld [vmem:[%s236 + $0x68] sm:$0xff]
    %v251 = vld [vmem:[%s236 + $0x70] sm:$0xff]
    %v252 = vld [vmem:[%s236 + $0x78] sm:$0xff]
    %s253 = scalar_lea.vmem [#allocation8], 2
    %v254 = vld [vmem:[%s253] sm:$0x3]
    %v256 = vperm.slane %v254, 0
    %v257 = vperm.slane %v254, 1
    %260 = vrot.lane.b32.xlu0 %v131, 64
    %v261 = vpop.permute.xlu0 %260
    %v262 = vsel %vm157, %v261, 0
    %264 = vmatpush.msra.mxu0 0.0
    %265 = vmatpush.msra.mxu0 0.0
    %266 = vmatpush.msra.mxu0 0.0
    %267 = vmatpush.msra.mxu0 0.0
    %268 = vmatpush.msra.mxu0 0.0
    %269 = vmatpush.msra.mxu0 0.0
    %270 = vmatpush.msra.mxu0 0.0
    %271 = vmatpush.msra.mxu0 0.0
    %272 = vmatpush.msra.mxu0 %v251
    %273 = vmatpush.msra.mxu0 %v249
    %274 = vmatpush.msra.mxu0 %v247
    %275 = vmatpush.msra.mxu0 %v245
    %276 = vmatpush.msra.mxu0 %v243
    %277 = vmatpush.msra.mxu0 %v241
    %278 = vmatpush.msra.mxu0 %v239
    %279 = vmatpush.msra.mxu0 %v237
    %280 = vmatmul.f32.gmra.mxu0 %v262
    %v281 = vpop.f32.mrf.mxu0
    %v282 = vadd.f32 %v256, %v281
    %283 = vdwg.mxu0
    %284 = vmatpush.msra.mxu0 0.0
    %285 = vmatpush.msra.mxu0 0.0
    %286 = vmatpush.msra.mxu0 0.0
    %287 = vmatpush.msra.mxu0 0.0
    %288 = vmatpush.msra.mxu0 0.0
    %289 = vmatpush.msra.mxu0 0.0
    %290 = vmatpush.msra.mxu0 0.0
    %291 = vmatpush.msra.mxu0 0.0
    %292 = vmatpush.msra.mxu0 %v252
    %293 = vmatpush.msra.mxu0 %v250
    %294 = vmatpush.msra.mxu0 %v248
    %295 = vmatpush.msra.mxu0 %v246
    %296 = vmatpush.msra.mxu0 %v244
    %297 = vmatpush.msra.mxu0 %v242
    %298 = vmatpush.msra.mxu0 %v240
    %299 = vmatpush.msra.mxu0 %v238
    %300 = vmatmul.f32.gmra.mxu0 %v262
    %v301 = vpop.f32.mrf.mxu0
    %v302 = vadd.f32 %v257, %v301
    %303 = vdwg.mxu0
    %s304 = scalar_lea.vmem [#allocation10], 16
    %v305 = vld [vmem:[%s304] sm:$0xff]
    %v306 = vld [vmem:[%s304 + $0x8] sm:$0xff]
    %v307 = vadd.f32 %v282, %v305
    %v308 = vadd.f32 %v302, %v306
    %v309 = vmax.f32 %v307, %v308
    %310 = vmax.xlane.f32.xlu0 %v309
    %v311 = vpop.xlane.xlu0 %310
    %vm312 = vcmp.eq.f32.partialorder %v307, %v311
    %vm313 = vcmp.eq.f32.partialorder %v308, %v311
    %v314 = vsel %vm312, %v133, 256
    %v315 = vsel %vm313, %v134, 256
    %vm316 = vcmp.lt.s32.totalorder %v314, %v315
    %v317 = vsel %vm316, %v314, %v315
    %v318 = vand.u32 %v317, 65535
    %v319 = vshra.s32 %v317, 16
    %v320 = vcvt.s32.f32 %v318
    %v321 = vcvt.s32.f32 %v319
    %322 = vmin.xlane.f32.xlu0 %v321
    %v323 = vpop.xlane.xlu0 %322
    %vm324 = vcmp.eq.f32.partialorder %v321, %v323
    %v325 = vsel %vm324, %v320, inf
    %326 = vmin.xlane.f32.xlu0 %v325
    %v327 = vpop.xlane.xlu0 %326
    %v328 = vcvt.f32.s32 %v327
    %v329 = vcvt.f32.s32 %v323
    %v330 = vshll.u32 %v329, 16
    %v331 = vadd.s32 %v330, %v328
    %vm332 = vcmp.eq.s32.totalorder %v133, %v331
    %vm333 = vcmp.eq.s32.totalorder %v134, %v331
    %v334 = vsel %vm332, 1, 0
    %v335 = vsel %vm333, 1, 0
    %v336 = vcvt.s32.f32 %v334
    %v337 = vcvt.s32.f32 %v335
    %s338 = scalar_lea.vmem [#allocation11], 16
    %339 = vst [vmem:[%s338] sm:$0xff] %v336
    %340 = vst [vmem:[%s338 + $0x8] sm:$0xff] %v337
    // Predicated region
    $region46: #{tpu_custom_call.1} parent=1 // pred_check
      _
    $region47: #{tpu_custom_call.1} parent=1 // pred_check_branch
      %342 = sbr.rel (0) target = $region49
    $region48: #{tpu_custom_call.1} parent=1 // pred_region
      %344 = vsyncadd [#allocation4], 0
      %s345 = sshll.u32 [#allocation11], 4
      %s346 = int_to_ptr.vmem [resolvable:$true] %s345
      %s347 = sshll.u32 %s6, 4
      %s348 = int_to_ptr.hbm [resolvable:$true] %s347
      %353 = dma.vmem_to_hbm [thread:$0]  %s346, 512, %s348, [#allocation4], 256, 256, 16
    $region49: #{tpu_custom_call.1} parent=1 // pred_fallthru
      _
    // Predicated region
    $region50: #{tpu_custom_call.1} parent=1 // pred_check
      _
    $region51: #{tpu_custom_call.1} parent=1 // pred_check_branch
      %355 = sbr.rel (0) target = $region53
    $region52: #{tpu_custom_call.1} parent=1 // pred_region
      %357 = dma.done [#allocation4], 512
    $region53: #{tpu_custom_call.1} parent=1 // pred_fallthru
      _
    %358 = vsyncpa [#allocation3], 1
    %359 = vsyncpa [#allocation6], 1
    %360 = vsyncpa [#allocation9], 1
    %361 = vsyncpa [#allocation4], 1

</llo_original>
